<compile_context>
chip_gen: v5e
topology: v5e:2x2
jax: 0.10.0
libtpu: 0.0.40
codegen_flags: <defaults>
</compile_context>

<pallas_src>
import functools

import jax
import jax.numpy as jnp
from jax.experimental import pallas as pl
from jax.experimental.pallas import tpu as pltpu

BN_EPS = 1e-5


def _round_up(x, m):
    return (x + m - 1) // m * m


def _mlp_predictor_kernel(x_ref, w1_ref, b1_ref, gamma_ref, beta_ref, a_ref,
                          w2_ref, b2_ref, out_ref, h_ref, stat0_ref, stat1_ref,
                          *, batch_size, tile_m):
    """Three-phase fused forward.

    Grid = (phase, batch_tile), both sequential:
      phase 0: h = x @ w1 + b1 (bf16 MXU feed, f32 acc); stage h (bf16) in VMEM;
               accumulate per-column masked sum (BN batch statistics pass 1).
      phase 1: finalize mean; accumulate centered per-column sum of squares from
               the staged h (exact two-pass variance, no cancellation).
      phase 2: fold BN into (scale, shift) once; per tile: normalize, PReLU,
               out = act @ w2 + b2; lane-dense output store.
    """
    p = pl.program_id(0)   # phase
    i = pl.program_id(1)   # batch tile index

    # Batch-padding mask (padded rows of x would otherwise contribute b1 to the
    # batch statistics).
    row = i * tile_m + jax.lax.broadcasted_iota(jnp.int32, (tile_m, 1), 0)
    valid = row < batch_size

    # ---------------- phase 0: Linear1 + stage h + column sums ----------------
    @pl.when((p == 0) & (i == 0))
    def _():
        stat0_ref[...] = jnp.zeros_like(stat0_ref)
        stat1_ref[...] = jnp.zeros_like(stat1_ref)

    @pl.when(p == 0)
    def _():
        h = jnp.dot(x_ref[...], w1_ref[...],
                    preferred_element_type=jnp.float32) + b1_ref[...]
        h_ref[i] = h.astype(jnp.bfloat16)          # computed once, reused twice
        stat0_ref[...] += jnp.sum(jnp.where(valid, h, 0.0), axis=0, keepdims=True)

    # ---------------- phase 1: mean, centered sum of squares ------------------
    @pl.when((p == 1) & (i == 0))
    def _():
        stat0_ref[...] *= 1.0 / batch_size          # sum -> mean

    @pl.when(p == 1)
    def _():
        h = h_ref[i].astype(jnp.float32)
        d = jnp.where(valid, h - stat0_ref[...], 0.0)
        stat1_ref[...] += jnp.sum(d * d, axis=0, keepdims=True)

    # ---------------- phase 2: fold BN once; normalize + PReLU + Linear2 ------
    @pl.when((p == 2) & (i == 0))
    def _():
        var = stat1_ref[...] * (1.0 / batch_size)   # biased, train-mode
        inv_std = jax.lax.rsqrt(var + BN_EPS)
        scale = inv_std * gamma_ref[...]
        shift = beta_ref[...] - stat0_ref[...] * scale
        stat1_ref[...] = scale                       # reuse scratch: scale
        stat0_ref[...] = shift                       # reuse scratch: shift

    @pl.when(p == 2)
    def _():
        h = h_ref[i].astype(jnp.float32)
        hn = h * stat1_ref[...] + stat0_ref[...]
        a = a_ref[0, 0]                              # PReLU scalar (SMEM)
        act = jnp.where(hn >= 0.0, hn, a * hn)
        out = jnp.dot(act.astype(jnp.bfloat16), w2_ref[...],
                      preferred_element_type=jnp.float32) + b2_ref[...]
        out_ref[...] = out


@functools.partial(jax.jit, static_argnames=("tile_m",))
def mlp_predictor(x, w1, b1, gamma, beta, a, w2, b2, *, tile_m=512):
    B, Din = x.shape
    H = w1.shape[1]
    Dout = w2.shape[1]

    # Lane-dense padding: all feature dims to multiples of 128; batch tile to a
    # multiple of 16 (bf16 sublane packing).  Zero padding is exact: padded H
    # columns stay 0 through BN/PReLU (gamma/beta padded with 0) and padded
    # Din / w2 rows/cols contribute 0.
    Dinp = _round_up(Din, 128)
    Hp = _round_up(H, 128)
    Dp = _round_up(Dout, 128)
    TM = _round_up(min(tile_m, _round_up(B, 16)), 16)
    Bp = _round_up(B, TM)
    nb = Bp // TM

    xp = jnp.zeros((Bp, Dinp), jnp.bfloat16).at[:B, :Din].set(x.astype(jnp.bfloat16))
    w1p = jnp.zeros((Dinp, Hp), jnp.bfloat16).at[:Din, :H].set(w1.astype(jnp.bfloat16))
    b1p = jnp.zeros((1, Hp), jnp.float32).at[:, :H].set(b1.astype(jnp.float32))
    gp = jnp.zeros((1, Hp), jnp.float32).at[:, :H].set(gamma.astype(jnp.float32))
    bp = jnp.zeros((1, Hp), jnp.float32).at[:, :H].set(beta.astype(jnp.float32))
    w2p = jnp.zeros((Hp, Dp), jnp.bfloat16).at[:H, :Dout].set(w2.astype(jnp.bfloat16))
    b2p = jnp.zeros((1, Dp), jnp.float32).at[:, :Dout].set(b2.astype(jnp.float32))
    ap = a.reshape(1, 1).astype(jnp.float32)

    kernel = functools.partial(_mlp_predictor_kernel, batch_size=B, tile_m=TM)

    const = lambda shape: pl.BlockSpec(shape, lambda p, i: (0, 0))
    # x tiles only move during phase 0; the block index then freezes so no x
    # re-read happens in phases 1/2.
    x_map = lambda p, i: (jnp.where(p == 0, i, nb - 1), 0)
    # Output block index is frozen at 0 until phase 2 -> no writeback of
    # uninitialized blocks during the statistics phases.
    out_map = lambda p, i: (jnp.where(p == 2, i, 0), 0)

    # Single matmul1 pass, single x read, single output write.
    flops = 2 * Bp * Dinp * Hp + 2 * Bp * Hp * Dp
    bytes_accessed = (xp.size * 2 + w1p.size * 2 + w2p.size * 2
                      + (b1p.size + gp.size + bp.size + b2p.size) * 4
                      + Bp * Dp * 4)

    # Explicit VMEM budget: pipeline double buffers (x, out, weights), the
    # staged-h scratch, stat vectors and live f32 temporaries, plus headroom.
    vmem_bytes = (
        2 * TM * Dinp * 2           # x double buffer (bf16)
        + 2 * TM * Dp * 4           # out double buffer (f32)
        + 2 * Dinp * Hp * 2         # w1 (default double-buffered)
        + 2 * Hp * Dp * 2           # w2
        + 2 * 3 * Hp * 4            # b1 / gamma / beta
        + 2 * Dp * 4                # b2
        + Bp * Hp * 2               # staged h (bf16)
        + 2 * Hp * 4                # stat scratch
        + 3 * TM * Hp * 4           # live f32 h / hn / act tiles
        + TM * Dp * 4               # live f32 output tile
    )
    vmem_limit = int(min(max(vmem_bytes * 5 // 4 + (1 << 20), 16 << 20), 64 << 20))

    out_p = pl.pallas_call(
        kernel,
        out_shape=jax.ShapeDtypeStruct((Bp, Dp), jnp.float32),
        grid_spec=pltpu.PrefetchScalarGridSpec(
            num_scalar_prefetch=0,
            grid=(3, nb),                                   # (phase, batch tile)
            in_specs=[
                pl.BlockSpec((TM, Dinp), x_map),            # x: streamed once
                const((Dinp, Hp)),                           # w1: VMEM resident
                const((1, Hp)),                              # b1
                const((1, Hp)),                              # gamma
                const((1, Hp)),                              # beta
                pl.BlockSpec(memory_space=pltpu.MemorySpace.SMEM),  # PReLU scalar
                const((Hp, Dp)),                             # w2: VMEM resident
                const((1, Dp)),                              # b2
            ],
            out_specs=pl.BlockSpec((TM, Dp), out_map),
            scratch_shapes=[
                pltpu.VMEM((nb, TM, Hp), jnp.bfloat16),      # staged h tiles
                pltpu.VMEM((1, Hp), jnp.float32),            # sum -> mean -> shift
                pltpu.VMEM((1, Hp), jnp.float32),            # sumsq -> scale
            ],
        ),
        compiler_params=pltpu.CompilerParams(
            # BN batch stats are a cross-tile reduction consumed by later
            # phases, so both grid axes stay sequential.
            dimension_semantics=("arbitrary", "arbitrary"),
            vmem_limit_bytes=vmem_limit,
        ),
        cost_estimate=pl.CostEstimate(
            flops=int(flops), transcendentals=int(Hp),
            bytes_accessed=int(bytes_accessed)),
    )(xp, w1p, b1p, gp, bp, ap, w2p, b2p)

    return out_p[:B, :Dout]


def init_params(key, input_size, hidden_size, output_size):
    """Deterministic PyTorch-style init (kaiming-uniform bounds for Linear)."""
    k1, k2, k3, k4 = jax.random.split(key, 4)

    bound1 = 1.0 / jnp.sqrt(input_size)
    w1 = jax.random.uniform(k1, (input_size, hidden_size), jnp.float32,
                            -bound1, bound1)
    b1 = jax.random.uniform(k2, (1, hidden_size), jnp.float32, -bound1, bound1)

    gamma = jnp.ones((1, hidden_size), jnp.float32)   # BatchNorm1d weight
    beta = jnp.zeros((1, hidden_size), jnp.float32)   # BatchNorm1d bias
    a = jnp.full((1, 1), 0.25, jnp.float32)           # PReLU single parameter

    bound2 = 1.0 / jnp.sqrt(hidden_size)
    w2 = jax.random.uniform(k3, (hidden_size, output_size), jnp.float32,
                            -bound2, bound2)
    b2 = jax.random.uniform(k4, (1, output_size), jnp.float32, -bound2, bound2)

    return w1, b1, gamma, beta, a, w2, b2


def reference(x, w1, b1, gamma, beta, a, w2, b2):
    """Pure-f32 JAX reference (PyTorch forward semantics, train-mode BN)."""
    h = x @ w1 + b1
    mean = h.mean(axis=0, keepdims=True)
    var = ((h - mean) ** 2).mean(axis=0, keepdims=True)   # biased, train mode
    hn = (h - mean) / jnp.sqrt(var + BN_EPS) * gamma + beta
    act = jnp.where(hn >= 0, hn, a[0, 0] * hn)
    return act @ w2 + b2


if __name__ == "__main__":
    key = jax.random.PRNGKey(0)
    kx, kp = jax.random.split(key)

    # Small shapes; B=10 deliberately not a multiple of the batch tile to
    # exercise the padded-row masking in the BN statistics.
    B, input_size, hidden_size, output_size = 10, 32, 64, 16
    x = jax.random.normal(kx, (B, input_size), jnp.float32)
    params = init_params(kp, input_size, hidden_size, output_size)

    out = mlp_predictor(x, *params)
    out = jax.block_until_ready(out)

    ref = reference(x, *params)
    assert out.shape == (B, output_size)
    # bf16 MXU operands / bf16-staged h (f32 accumulation) vs. pure-f32
    # reference -> loose tolerance.
    assert jnp.allclose(out, ref, atol=5e-2, rtol=5e-2), "mismatch vs reference"

    print("KERNEL_OK")
</pallas_src>

<mosaic_0001>
module attributes {stable_mosaic.version = 11 : i64} {
  func.func @_mlp_predictor_kernel(%arg0: i32, %arg1: i32, %arg2: memref<16x128xbf16, #tpu.memory_space<vmem>>, %arg3: memref<128x128xbf16, #tpu.memory_space<vmem>>, %arg4: memref<1x128xf32, #tpu.memory_space<vmem>>, %arg5: memref<1x128xf32, #tpu.memory_space<vmem>>, %arg6: memref<1x128xf32, #tpu.memory_space<vmem>>, %arg7: memref<1x1xf32, #tpu.memory_space<smem>>, %arg8: memref<128x128xbf16, #tpu.memory_space<vmem>>, %arg9: memref<1x128xf32, #tpu.memory_space<vmem>>, %arg10: memref<16x128xf32, #tpu.memory_space<vmem>>, %arg11: memref<1x16x128xbf16, #tpu.memory_space<vmem>>, %arg12: memref<1x128xf32, #tpu.memory_space<vmem>>, %arg13: memref<1x128xf32, #tpu.memory_space<vmem>>) attributes {dimension_semantics = [#tpu.dimension_semantics<arbitrary>, #tpu.dimension_semantics<arbitrary>], iteration_bounds = array<i64: 3, 1>, scalar_prefetch = 0 : i64, scratch_operands = 3 : i64, tpu.core_type = #tpu.core_type<tc>, window_params = [{transform_indices = @transform_0, window_bounds = array<i64: 16, 128>}, {pipeline_mode = #tpu.pipeline_mode<synchronous>, transform_indices = @transform_1, window_bounds = array<i64: 128, 128>}, {pipeline_mode = #tpu.pipeline_mode<synchronous>, transform_indices = @transform_2, window_bounds = array<i64: 1, 128>}, {pipeline_mode = #tpu.pipeline_mode<synchronous>, transform_indices = @transform_3, window_bounds = array<i64: 1, 128>}, {pipeline_mode = #tpu.pipeline_mode<synchronous>, transform_indices = @transform_4, window_bounds = array<i64: 1, 128>}, {transform_indices = @transform_5, window_bounds = array<i64: 1, 1>}, {pipeline_mode = #tpu.pipeline_mode<synchronous>, transform_indices = @transform_6, window_bounds = array<i64: 128, 128>}, {pipeline_mode = #tpu.pipeline_mode<synchronous>, transform_indices = @transform_7, window_bounds = array<i64: 1, 128>}, {transform_indices = @transform_8, window_bounds = array<i64: 16, 128>}]} {
    %c16_i32 = arith.constant 16 : i32
    %0 = arith.muli %arg1, %c16_i32 : i32
    %1 = tpu.iota {dimensions = array<i32: 0>} : vector<16x1xi32>
    %2 = vector.broadcast %0 : i32 to vector<16x1xi32>
    %3 = arith.addi %2, %1 : vector<16x1xi32>
    %c10_i32 = arith.constant 10 : i32
    %4 = vector.broadcast %c10_i32 : i32 to vector<16x1xi32>
    %5 = arith.cmpi slt, %3, %4 : vector<16x1xi32>
    %c0_i32 = arith.constant 0 : i32
    %6 = arith.cmpi eq, %arg0, %c0_i32 : i32
    %c0_i32_0 = arith.constant 0 : i32
    %7 = arith.cmpi eq, %arg1, %c0_i32_0 : i32
    %8 = arith.andi %6, %7 : i1
    %9 = arith.extui %8 : i1 to i32
    %c0_i32_1 = arith.constant 0 : i32
    %10 = arith.cmpi ne, %9, %c0_i32_1 : i32
    scf.if %10 {
      %cst = arith.constant 0.000000e+00 : f32
      %30 = vector.broadcast %cst : f32 to vector<1x128xf32>
      %c0 = arith.constant 0 : index
      %c0_12 = arith.constant 0 : index
      %31 = vector.load %arg12[%c0, %c0_12] : memref<1x128xf32, #tpu.memory_space<vmem>>, vector<1x128xf32>
      tpu.vector_store %arg12[%c0, %c0_12], %30 {strides = array<i32>} : memref<1x128xf32, #tpu.memory_space<vmem>>, vector<1x128xf32>,
      %cst_13 = arith.constant 0.000000e+00 : f32
      %32 = vector.broadcast %cst_13 : f32 to vector<1x128xf32>
      %c0_14 = arith.constant 0 : index
      %c0_15 = arith.constant 0 : index
      %33 = vector.load %arg13[%c0_14, %c0_15] : memref<1x128xf32, #tpu.memory_space<vmem>>, vector<1x128xf32>
      tpu.vector_store %arg13[%c0_14, %c0_15], %32 {strides = array<i32>} : memref<1x128xf32, #tpu.memory_space<vmem>>, vector<1x128xf32>,
    } else {
    }
    %c0_i32_2 = arith.constant 0 : i32
    %11 = arith.cmpi eq, %arg0, %c0_i32_2 : i32
    %12 = arith.extui %11 : i1 to i32
    %c0_i32_3 = arith.constant 0 : i32
    %13 = arith.cmpi ne, %12, %c0_i32_3 : i32
    scf.if %13 {
      %c0 = arith.constant 0 : index
      %c0_12 = arith.constant 0 : index
      %30 = vector.load %arg2[%c0, %c0_12] : memref<16x128xbf16, #tpu.memory_space<vmem>>, vector<16x128xbf16>
      %c0_13 = arith.constant 0 : index
      %c0_14 = arith.constant 0 : index
      %31 = vector.load %arg3[%c0_13, %c0_14] : memref<128x128xbf16, #tpu.memory_space<vmem>>, vector<128x128xbf16>
      %cst = arith.constant dense<0.000000e+00> : vector<16x128xf32>
      %32 = tpu.matmul %30, %31, %cst {dimension_numbers = #tpu.dot_dimension_numbers<[1], [0], [0], [1], [0, 0, 1, 1], [], []>} : vector<16x128xbf16>, vector<128x128xbf16>, vector<16x128xf32> -> vector<16x128xf32>
      %c0_15 = arith.constant 0 : index
      %c0_16 = arith.constant 0 : index
      %33 = vector.load %arg4[%c0_15, %c0_16] : memref<1x128xf32, #tpu.memory_space<vmem>>, vector<1x128xf32>
      %34 = vector.broadcast %33 : vector<1x128xf32> to vector<16x128xf32>
      %35 = arith.addf %32, %34 : vector<16x128xf32>
      %36 = arith.truncf %35 : vector<16x128xf32> to vector<16x128xbf16>
      %37 = arith.index_cast %arg1 : i32 to index
      %c0_17 = arith.constant 0 : index
      %c0_18 = arith.constant 0 : index
      %38 = vector.load %arg11[%37, %c0_17, %c0_18] : memref<1x16x128xbf16, #tpu.memory_space<vmem>>, vector<1x16x128xbf16>
      %39 = vector.shape_cast %38 : vector<1x16x128xbf16> to vector<16x128xbf16>
      %40 = vector.shape_cast %36 : vector<16x128xbf16> to vector<1x16x128xbf16>
      tpu.vector_store %arg11[%37, %c0_17, %c0_18], %40 {strides = array<i32>} : memref<1x16x128xbf16, #tpu.memory_space<vmem>>, vector<1x16x128xbf16>,
      %c0_19 = arith.constant 0 : index
      %c0_20 = arith.constant 0 : index
      %41 = vector.load %arg12[%c0_19, %c0_20] : memref<1x128xf32, #tpu.memory_space<vmem>>, vector<1x128xf32>
      %cst_21 = arith.constant 0.000000e+00 : f32
      %42 = vector.shape_cast %5 : vector<16x1xi1> to vector<16x1xi1>
      %43 = vector.broadcast %42 : vector<16x1xi1> to vector<16x128xi1>
      %44 = vector.broadcast %cst_21 : f32 to vector<16x128xf32>
      %45 = arith.select %43, %35, %44 : vector<16x128xi1>, vector<16x128xf32>
      %cst_22 = arith.constant dense<0.000000e+00> : vector<128xf32>
      %46 = vector.multi_reduction <add>, %45, %cst_22 [0] : vector<16x128xf32> to vector<128xf32>
      %47 = vector.shape_cast %46 : vector<128xf32> to vector<1x128xf32>
      %48 = arith.addf %41, %47 : vector<1x128xf32>
      %c0_23 = arith.constant 0 : index
      %c0_24 = arith.constant 0 : index
      %49 = vector.load %arg12[%c0_23, %c0_24] : memref<1x128xf32, #tpu.memory_space<vmem>>, vector<1x128xf32>
      tpu.vector_store %arg12[%c0_23, %c0_24], %48 {strides = array<i32>} : memref<1x128xf32, #tpu.memory_space<vmem>>, vector<1x128xf32>,
    } else {
    }
    %c1_i32 = arith.constant 1 : i32
    %14 = arith.cmpi eq, %arg0, %c1_i32 : i32
    %c0_i32_4 = arith.constant 0 : i32
    %15 = arith.cmpi eq, %arg1, %c0_i32_4 : i32
    %16 = arith.andi %14, %15 : i1
    %17 = arith.extui %16 : i1 to i32
    %c0_i32_5 = arith.constant 0 : i32
    %18 = arith.cmpi ne, %17, %c0_i32_5 : i32
    scf.if %18 {
      %c0 = arith.constant 0 : index
      %c0_12 = arith.constant 0 : index
      %30 = vector.load %arg12[%c0, %c0_12] : memref<1x128xf32, #tpu.memory_space<vmem>>, vector<1x128xf32>
      %cst = arith.constant 1.000000e-01 : f32
      %31 = vector.broadcast %cst : f32 to vector<1x128xf32>
      %32 = arith.mulf %30, %31 : vector<1x128xf32>
      %c0_13 = arith.constant 0 : index
      %c0_14 = arith.constant 0 : index
      %33 = vector.load %arg12[%c0_13, %c0_14] : memref<1x128xf32, #tpu.memory_space<vmem>>, vector<1x128xf32>
      tpu.vector_store %arg12[%c0_13, %c0_14], %32 {strides = array<i32>} : memref<1x128xf32, #tpu.memory_space<vmem>>, vector<1x128xf32>,
    } else {
    }
    %c1_i32_6 = arith.constant 1 : i32
    %19 = arith.cmpi eq, %arg0, %c1_i32_6 : i32
    %20 = arith.extui %19 : i1 to i32
    %c0_i32_7 = arith.constant 0 : i32
    %21 = arith.cmpi ne, %20, %c0_i32_7 : i32
    scf.if %21 {
      %30 = arith.index_cast %arg1 : i32 to index
      %c0 = arith.constant 0 : index
      %c0_12 = arith.constant 0 : index
      %31 = vector.load %arg11[%30, %c0, %c0_12] : memref<1x16x128xbf16, #tpu.memory_space<vmem>>, vector<1x16x128xbf16>
      %32 = vector.shape_cast %31 : vector<1x16x128xbf16> to vector<16x128xbf16>
      %33 = arith.extf %32 : vector<16x128xbf16> to vector<16x128xf32>
      %c0_13 = arith.constant 0 : index
      %c0_14 = arith.constant 0 : index
      %34 = vector.load %arg12[%c0_13, %c0_14] : memref<1x128xf32, #tpu.memory_space<vmem>>, vector<1x128xf32>
      %35 = vector.broadcast %34 : vector<1x128xf32> to vector<16x128xf32>
      %36 = arith.subf %33, %35 : vector<16x128xf32>
      %cst = arith.constant 0.000000e+00 : f32
      %37 = vector.shape_cast %5 : vector<16x1xi1> to vector<16x1xi1>
      %38 = vector.broadcast %37 : vector<16x1xi1> to vector<16x128xi1>
      %39 = vector.broadcast %cst : f32 to vector<16x128xf32>
      %40 = arith.select %38, %36, %39 : vector<16x128xi1>, vector<16x128xf32>
      %c0_15 = arith.constant 0 : index
      %c0_16 = arith.constant 0 : index
      %41 = vector.load %arg13[%c0_15, %c0_16] : memref<1x128xf32, #tpu.memory_space<vmem>>, vector<1x128xf32>
      %42 = arith.mulf %40, %40 : vector<16x128xf32>
      %cst_17 = arith.constant dense<0.000000e+00> : vector<128xf32>
      %43 = vector.multi_reduction <add>, %42, %cst_17 [0] : vector<16x128xf32> to vector<128xf32>
      %44 = vector.shape_cast %43 : vector<128xf32> to vector<1x128xf32>
      %45 = arith.addf %41, %44 : vector<1x128xf32>
      %c0_18 = arith.constant 0 : index
      %c0_19 = arith.constant 0 : index
      %46 = vector.load %arg13[%c0_18, %c0_19] : memref<1x128xf32, #tpu.memory_space<vmem>>, vector<1x128xf32>
      tpu.vector_store %arg13[%c0_18, %c0_19], %45 {strides = array<i32>} : memref<1x128xf32, #tpu.memory_space<vmem>>, vector<1x128xf32>,
    } else {
    }
    %c2_i32 = arith.constant 2 : i32
    %22 = arith.cmpi eq, %arg0, %c2_i32 : i32
    %c0_i32_8 = arith.constant 0 : i32
    %23 = arith.cmpi eq, %arg1, %c0_i32_8 : i32
    %24 = arith.andi %22, %23 : i1
    %25 = arith.extui %24 : i1 to i32
    %c0_i32_9 = arith.constant 0 : i32
    %26 = arith.cmpi ne, %25, %c0_i32_9 : i32
    scf.if %26 {
      %c0 = arith.constant 0 : index
      %c0_12 = arith.constant 0 : index
      %30 = vector.load %arg13[%c0, %c0_12] : memref<1x128xf32, #tpu.memory_space<vmem>>, vector<1x128xf32>
      %cst = arith.constant 1.000000e-01 : f32
      %31 = vector.broadcast %cst : f32 to vector<1x128xf32>
      %32 = arith.mulf %30, %31 : vector<1x128xf32>
      %cst_13 = arith.constant 9.99999974E-6 : f32
      %33 = vector.broadcast %cst_13 : f32 to vector<1x128xf32>
      %34 = arith.addf %32, %33 : vector<1x128xf32>
      %35 = math.rsqrt %34 : vector<1x128xf32>
      %c0_14 = arith.constant 0 : index
      %c0_15 = arith.constant 0 : index
      %36 = vector.load %arg5[%c0_14, %c0_15] : memref<1x128xf32, #tpu.memory_space<vmem>>, vector<1x128xf32>
      %37 = arith.mulf %35, %36 : vector<1x128xf32>
      %c0_16 = arith.constant 0 : index
      %c0_17 = arith.constant 0 : index
      %38 = vector.load %arg6[%c0_16, %c0_17] : memref<1x128xf32, #tpu.memory_space<vmem>>, vector<1x128xf32>
      %c0_18 = arith.constant 0 : index
      %c0_19 = arith.constant 0 : index
      %39 = vector.load %arg12[%c0_18, %c0_19] : memref<1x128xf32, #tpu.memory_space<vmem>>, vector<1x128xf32>
      %40 = arith.mulf %39, %37 : vector<1x128xf32>
      %41 = arith.subf %38, %40 : vector<1x128xf32>
      %c0_20 = arith.constant 0 : index
      %c0_21 = arith.constant 0 : index
      %42 = vector.load %arg13[%c0_20, %c0_21] : memref<1x128xf32, #tpu.memory_space<vmem>>, vector<1x128xf32>
      tpu.vector_store %arg13[%c0_20, %c0_21], %37 {strides = array<i32>} : memref<1x128xf32, #tpu.memory_space<vmem>>, vector<1x128xf32>,
      %c0_22 = arith.constant 0 : index
      %c0_23 = arith.constant 0 : index
      %43 = vector.load %arg12[%c0_22, %c0_23] : memref<1x128xf32, #tpu.memory_space<vmem>>, vector<1x128xf32>
      tpu.vector_store %arg12[%c0_22, %c0_23], %41 {strides = array<i32>} : memref<1x128xf32, #tpu.memory_space<vmem>>, vector<1x128xf32>,
    } else {
    }
    %c2_i32_10 = arith.constant 2 : i32
    %27 = arith.cmpi eq, %arg0, %c2_i32_10 : i32
    %28 = arith.extui %27 : i1 to i32
    %c0_i32_11 = arith.constant 0 : i32
    %29 = arith.cmpi ne, %28, %c0_i32_11 : i32
    scf.if %29 {
      %30 = arith.index_cast %arg1 : i32 to index
      %c0 = arith.constant 0 : index
      %c0_12 = arith.constant 0 : index
      %31 = vector.load %arg11[%30, %c0, %c0_12] : memref<1x16x128xbf16, #tpu.memory_space<vmem>>, vector<1x16x128xbf16>
      %32 = vector.shape_cast %31 : vector<1x16x128xbf16> to vector<16x128xbf16>
      %33 = arith.extf %32 : vector<16x128xbf16> to vector<16x128xf32>
      %c0_13 = arith.constant 0 : index
      %c0_14 = arith.constant 0 : index
      %34 = vector.load %arg13[%c0_13, %c0_14] : memref<1x128xf32, #tpu.memory_space<vmem>>, vector<1x128xf32>
      %35 = vector.broadcast %34 : vector<1x128xf32> to vector<16x128xf32>
      %36 = arith.mulf %33, %35 : vector<16x128xf32>
      %c0_15 = arith.constant 0 : index
      %c0_16 = arith.constant 0 : index
      %37 = vector.load %arg12[%c0_15, %c0_16] : memref<1x128xf32, #tpu.memory_space<vmem>>, vector<1x128xf32>
      %38 = vector.broadcast %37 : vector<1x128xf32> to vector<16x128xf32>
      %39 = arith.addf %36, %38 : vector<16x128xf32>
      %c0_17 = arith.constant 0 : index
      %c0_18 = arith.constant 0 : index
      %40 = memref.load %arg7[%c0_17, %c0_18] : memref<1x1xf32, #tpu.memory_space<smem>>
      %cst = arith.constant 0.000000e+00 : f32
      %41 = vector.broadcast %cst : f32 to vector<16x128xf32>
      %42 = arith.cmpf oge, %39, %41 : vector<16x128xf32>
      %43 = vector.broadcast %40 : f32 to vector<16x128xf32>
      %44 = arith.mulf %43, %39 : vector<16x128xf32>
      %45 = arith.select %42, %39, %44 : vector<16x128xi1>, vector<16x128xf32>
      %46 = arith.truncf %45 : vector<16x128xf32> to vector<16x128xbf16>
      %c0_19 = arith.constant 0 : index
      %c0_20 = arith.constant 0 : index
      %47 = vector.load %arg8[%c0_19, %c0_20] : memref<128x128xbf16, #tpu.memory_space<vmem>>, vector<128x128xbf16>
      %cst_21 = arith.constant dense<0.000000e+00> : vector<16x128xf32>
      %48 = tpu.matmul %46, %47, %cst_21 {dimension_numbers = #tpu.dot_dimension_numbers<[1], [0], [0], [1], [0, 0, 1, 1], [], []>} : vector<16x128xbf16>, vector<128x128xbf16>, vector<16x128xf32> -> vector<16x128xf32>
      %c0_22 = arith.constant 0 : index
      %c0_23 = arith.constant 0 : index
      %49 = vector.load %arg9[%c0_22, %c0_23] : memref<1x128xf32, #tpu.memory_space<vmem>>, vector<1x128xf32>
      %50 = vector.broadcast %49 : vector<1x128xf32> to vector<16x128xf32>
      %51 = arith.addf %48, %50 : vector<16x128xf32>
      %c0_24 = arith.constant 0 : index
      %c0_25 = arith.constant 0 : index
      %52 = vector.load %arg10[%c0_24, %c0_25] : memref<16x128xf32, #tpu.memory_space<vmem>>, vector<16x128xf32>
      tpu.vector_store %arg10[%c0_24, %c0_25], %51 {strides = array<i32>} : memref<16x128xf32, #tpu.memory_space<vmem>>, vector<16x128xf32>,
    } else {
    }
    return
  }
  func.func @transform_0(%arg0: i32, %arg1: i32) -> (i32, i32) {
    %c0_i32 = arith.constant 0 : i32
    %0 = arith.cmpi eq, %arg0, %c0_i32 : i32
    %c0_i32_0 = arith.constant 0 : i32
    %1 = arith.select %0, %arg1, %c0_i32_0 : i32
    %c0_i32_1 = arith.constant 0 : i32
    %c0_i32_2 = arith.constant 0 : i32
    return %1, %c0_i32_1 : i32, i32
  }
  func.func @transform_1(%arg0: i32, %arg1: i32) -> (i32, i32) {
    %c0_i32 = arith.constant 0 : i32
    %c0_i32_0 = arith.constant 0 : i32
    %c0_i32_1 = arith.constant 0 : i32
    return %c0_i32, %c0_i32_0 : i32, i32
  }
  func.func @transform_2(%arg0: i32, %arg1: i32) -> (i32, i32) {
    %c0_i32 = arith.constant 0 : i32
    %c0_i32_0 = arith.constant 0 : i32
    %c0_i32_1 = arith.constant 0 : i32
    return %c0_i32, %c0_i32_0 : i32, i32
  }
  func.func @transform_3(%arg0: i32, %arg1: i32) -> (i32, i32) {
    %c0_i32 = arith.constant 0 : i32
    %c0_i32_0 = arith.constant 0 : i32
    %c0_i32_1 = arith.constant 0 : i32
    return %c0_i32, %c0_i32_0 : i32, i32
  }
  func.func @transform_4(%arg0: i32, %arg1: i32) -> (i32, i32) {
    %c0_i32 = arith.constant 0 : i32
    %c0_i32_0 = arith.constant 0 : i32
    %c0_i32_1 = arith.constant 0 : i32
    return %c0_i32, %c0_i32_0 : i32, i32
  }
  func.func @transform_5(%arg0: i32, %arg1: i32) -> (i32, i32) {
    %c0_i32 = arith.constant 0 : i32
    %c0_i32_0 = arith.constant 0 : i32
    %c0_i32_1 = arith.constant 0 : i32
    return %c0_i32, %c0_i32_0 : i32, i32
  }
  func.func @transform_6(%arg0: i32, %arg1: i32) -> (i32, i32) {
    %c0_i32 = arith.constant 0 : i32
    %c0_i32_0 = arith.constant 0 : i32
    %c0_i32_1 = arith.constant 0 : i32
    return %c0_i32, %c0_i32_0 : i32, i32
  }
  func.func @transform_7(%arg0: i32, %arg1: i32) -> (i32, i32) {
    %c0_i32 = arith.constant 0 : i32
    %c0_i32_0 = arith.constant 0 : i32
    %c0_i32_1 = arith.constant 0 : i32
    return %c0_i32, %c0_i32_0 : i32, i32
  }
  func.func @transform_8(%arg0: i32, %arg1: i32) -> (i32, i32) {
    %c2_i32 = arith.constant 2 : i32
    %0 = arith.cmpi eq, %arg0, %c2_i32 : i32
    %c0_i32 = arith.constant 0 : i32
    %1 = arith.select %0, %arg1, %c0_i32 : i32
    %c0_i32_0 = arith.constant 0 : i32
    %c0_i32_1 = arith.constant 0 : i32
    return %1, %c0_i32_0 : i32, i32
  }
}

</mosaic_0001>

<llo_original>
// kernel: mlp_predictor.1
$region0: #{mlp_predictor.1}
  #allocation0 [shape = 'u32[]', space=smem, size = 0x4, offset = 0x4, fixed_abs, tag = 'smem constant byte address 0x4 - core index']
  #allocation1 [shape = 'u32[72,128]{1,0:T(1,128)}', space=vmem, size = 0x9000, scoped, tag = 'internal scratch']
  #allocation2 [shape = 'bf16[1,16,128]{2,1,0:T(8,128)(2,1)}', space=vmem, size = 0x1000, scoped, tag = 'scratch operand']
  #allocation3 [shape = 'f32[1,128]{1,0:T(1,128)}', space=vmem, size = 0x200, scoped, tag = 'scratch operand']
  #allocation4 [shape = 'f32[1,128]{1,0:T(1,128)}', space=vmem, size = 0x200, scoped, tag = 'scratch operand']
  #allocation5 [shape = 'f32[1,1]{1,0:T(1,128)S(6)}', space=smem, size = 0x200, scoped, tag = 'scoped memory for mlp_predictor.1']
  %s0 = inlined_call_operand.vmem [shape: bf16[16,128], index: 0, kind: input, shape index: {}]
  %s1 = inlined_call_operand.vmem [shape: bf16[128,128], index: 1, kind: input, shape index: {}]
  %s2 = inlined_call_operand.vmem [shape: f32[1,128], index: 2, kind: input, shape index: {}]
  %s3 = inlined_call_operand.vmem [shape: f32[1,128], index: 3, kind: input, shape index: {}]
  %s4 = inlined_call_operand.vmem [shape: f32[1,128], index: 4, kind: input, shape index: {}]
  %s5 = inlined_call_operand.<no memory space> [shape: f32[1,1], index: 5, kind: input, shape index: {}]
  %s6 = inlined_call_operand.vmem [shape: bf16[128,128], index: 6, kind: input, shape index: {}]
  %s7 = inlined_call_operand.vmem [shape: f32[1,128], index: 7, kind: input, shape index: {}]
  %s8 = inlined_call_operand.hbm [shape: f32[16,128], index: 8, kind: output, shape index: {}]
  %s9 = sld [smem:[#allocation0]]
  $region89: #{mlp_predictor.1} parent=0
    _
  %s11 = ssub.s32 1, %s9
  %s12 = scalar_select 0, %s11, %s9
  %13 = sst [smem:[#allocation5]] %s5
  $region1: #{mlp_predictor.1} parent=0
    #allocation6 [shape = 'u8[16384]{0}', space=vmem, size = 0x4000, scoped, tag = 'output window, operand 0']
    #allocation7 [shape = 's32[2]{0}', space=sflag, size = 0x8, scoped, tag = 'scoped memory for mlp_predictor.1']
    %14 = vsyncpa [#allocation7], 0
    %s15 = scalar_lea.sflag [#allocation7], 1
    %16 = vsyncpa %s15, 0
    loop: start=0, step=1, limit=5
    $region2: #{mlp_predictor.1} parent=1 // loop_pre_header
      _
    $region3: #{mlp_predictor.1} parent=1 // loop_header
      %s18 = sphi 0, %s22
      %p19 = scmp.ge.s32.totalorder %s18, 5
      %s25 = sphi 0, %s37
      %s26 = sphi 0, %s33
      %s27 = sphi 0, %s25
      %s28 = sphi 0, %s26
      %s29 = sphi 0, %s27
      %s30 = sphi 0, %s28
      %s44 = sphi 0, %s46
      %s47 = sphi 0, %s44
      %s48 = sphi 0, %s47
      %s64 = sphi 0, %s48
      %s68 = sphi 0, %s68
      %s70 = sphi 0, %s68
      %s71 = sphi 0, %s70
      %s85 = sphi 0, %s71
      %s89 = sphi 0, %s89
      %s91 = sphi 0, %s89
      %s92 = sphi 0, %s91
      %s106 = sphi 0, %s92
      %s110 = sphi 0, %s110
      %s112 = sphi 0, %s110
      %s113 = sphi 0, %s112
      %s127 = sphi 0, %s113
      %s131 = sphi 0, %s131
      %s133 = sphi 0, %s131
      %s134 = sphi 0, %s133
      %s148 = sphi 0, %s134
      %s152 = sphi 0, %s152
      %s154 = sphi 0, %s152
      %s155 = sphi 0, %s154
      %s169 = sphi 0, %s155
      %s173 = sphi 0, %s173
      %s175 = sphi 0, %s173
      %s176 = sphi 0, %s175
      %s190 = sphi 0, %s176
      %s194 = sphi 0, %s194
      %s196 = sphi 0, %s194
      %s197 = sphi 0, %s196
      %s211 = sphi 0, %s197
      %s221 = sphi 0, %s223
      %s224 = sphi 0, %s221
      %s225 = sphi 0, %s224
      %s241 = sphi 0, %s225
    $region4: #{mlp_predictor.1} parent=1 // loop_header_branch
      %21 = sbr.rel (%p19) target = $region8
    $region5: #{mlp_predictor.1} parent=1 // loop_body
      %s23 = ssub.s32 %s18, 1
      %s24 = ssub.s32 %s18, 2
      %s31 = sadd.s32 1, %s26
      %p32 = scmp.ge.s32.totalorder %s31, 1
      %s33 = scalar_select %p32, 0, %s31
      %s34 = sadd.s32 1, %s25
      %s35 = scalar_select %p32, %s34, %s25
      %p36 = scmp.ge.s32.totalorder %s35, 3
      %s37 = scalar_select %p36, 0, %s35
      %p38 = scmp.eq.s32.totalorder %s25, 0
      %s39 = scalar_select %p38, %s26, 0
      %p40 = scmp.eq.s32.totalorder %s37, 0
      %s41 = scalar_select %p40, %s33, 0
      %s42 = ssub.s32 %s39, %s41
      %p43 = scmp.eq.s32.totalorder %s42, 0
      %s45 = sadd.s32 %s44, 1
      %s46 = scalar_select %p43, %s44, %s45
      %p49 = pneg %p43
      %p50 = scmp.eq.s32.totalorder %s18, 2
      %p51 = por %p49, %p50
      %p52 = scmp.ne.s32.totalorder %s44, %s47
      %p53 = scmp.eq.s32.totalorder %s18, 0
      %p54 = por %p52, %p53
      %p55 = scmp.ne.s32.totalorder %s44, %s47
      %p56 = scmp.eq.s32.totalorder %s23, 2
      %p57 = por %p55, %p56
      %p58 = scmp.ne.s32.totalorder %s47, %s48
      %p59 = scmp.eq.s32.totalorder %s23, 0
      %p60 = por %p58, %p59
      %p61 = scmp.ne.s32.totalorder %s47, %s48
      %p62 = scmp.eq.s32.totalorder %s24, 2
      %p63 = por %p61, %p62
      %p65 = scmp.ne.s32.totalorder %s48, %s64
      %p66 = scmp.eq.s32.totalorder %s24, 0
      %p67 = por %p65, %p66
      %s69 = sadd.s32 %s68, 1
      %p72 = scmp.eq.s32.totalorder %s18, 2
      %p73 = scmp.ne.s32.totalorder %s68, %s70
      %p74 = scmp.eq.s32.totalorder %s18, 0
      %p75 = por %p73, %p74
      %p76 = scmp.ne.s32.totalorder %s68, %s70
      %p77 = scmp.eq.s32.totalorder %s23, 2
      %p78 = por %p76, %p77
      %p79 = scmp.ne.s32.totalorder %s70, %s71
      %p80 = scmp.eq.s32.totalorder %s23, 0
      %p81 = por %p79, %p80
      %p82 = scmp.ne.s32.totalorder %s70, %s71
      %p83 = scmp.eq.s32.totalorder %s24, 2
      %p84 = por %p82, %p83
      %p86 = scmp.ne.s32.totalorder %s71, %s85
      %p87 = scmp.eq.s32.totalorder %s24, 0
      %p88 = por %p86, %p87
      %s90 = sadd.s32 %s89, 1
      %p93 = scmp.eq.s32.totalorder %s18, 2
      %p94 = scmp.ne.s32.totalorder %s89, %s91
      %p95 = scmp.eq.s32.totalorder %s18, 0
      %p96 = por %p94, %p95
      %p97 = scmp.ne.s32.totalorder %s89, %s91
      %p98 = scmp.eq.s32.totalorder %s23, 2
      %p99 = por %p97, %p98
      %p100 = scmp.ne.s32.totalorder %s91, %s92
      %p101 = scmp.eq.s32.totalorder %s23, 0
      %p102 = por %p100, %p101
      %p103 = scmp.ne.s32.totalorder %s91, %s92
      %p104 = scmp.eq.s32.totalorder %s24, 2
      %p105 = por %p103, %p104
      %p107 = scmp.ne.s32.totalorder %s92, %s106
      %p108 = scmp.eq.s32.totalorder %s24, 0
      %p109 = por %p107, %p108
      %s111 = sadd.s32 %s110, 1
      %p114 = scmp.eq.s32.totalorder %s18, 2
      %p115 = scmp.ne.s32.totalorder %s110, %s112
      %p116 = scmp.eq.s32.totalorder %s18, 0
      %p117 = por %p115, %p116
      %p118 = scmp.ne.s32.totalorder %s110, %s112
      %p119 = scmp.eq.s32.totalorder %s23, 2
      %p120 = por %p118, %p119
      %p121 = scmp.ne.s32.totalorder %s112, %s113
      %p122 = scmp.eq.s32.totalorder %s23, 0
      %p123 = por %p121, %p122
      %p124 = scmp.ne.s32.totalorder %s112, %s113
      %p125 = scmp.eq.s32.totalorder %s24, 2
      %p126 = por %p124, %p125
      %p128 = scmp.ne.s32.totalorder %s113, %s127
      %p129 = scmp.eq.s32.totalorder %s24, 0
      %p130 = por %p128, %p129
      %s132 = sadd.s32 %s131, 1
      %p135 = scmp.eq.s32.totalorder %s18, 2
      %p136 = scmp.ne.s32.totalorder %s131, %s133
      %p137 = scmp.eq.s32.totalorder %s18, 0
      %p138 = por %p136, %p137
      %p139 = scmp.ne.s32.totalorder %s131, %s133
      %p140 = scmp.eq.s32.totalorder %s23, 2
      %p141 = por %p139, %p140
      %p142 = scmp.ne.s32.totalorder %s133, %s134
      %p143 = scmp.eq.s32.totalorder %s23, 0
      %p144 = por %p142, %p143
      %p145 = scmp.ne.s32.totalorder %s133, %s134
      %p146 = scmp.eq.s32.totalorder %s24, 2
      %p147 = por %p145, %p146
      %p149 = scmp.ne.s32.totalorder %s134, %s148
      %p150 = scmp.eq.s32.totalorder %s24, 0
      %p151 = por %p149, %p150
      %s153 = sadd.s32 %s152, 1
      %p156 = scmp.eq.s32.totalorder %s18, 2
      %p157 = scmp.ne.s32.totalorder %s152, %s154
      %p158 = scmp.eq.s32.totalorder %s18, 0
      %p159 = por %p157, %p158
      %p160 = scmp.ne.s32.totalorder %s152, %s154
      %p161 = scmp.eq.s32.totalorder %s23, 2
      %p162 = por %p160, %p161
      %p163 = scmp.ne.s32.totalorder %s154, %s155
      %p164 = scmp.eq.s32.totalorder %s23, 0
      %p165 = por %p163, %p164
      %p166 = scmp.ne.s32.totalorder %s154, %s155
      %p167 = scmp.eq.s32.totalorder %s24, 2
      %p168 = por %p166, %p167
      %p170 = scmp.ne.s32.totalorder %s155, %s169
      %p171 = scmp.eq.s32.totalorder %s24, 0
      %p172 = por %p170, %p171
      %s174 = sadd.s32 %s173, 1
      %p177 = scmp.eq.s32.totalorder %s18, 2
      %p178 = scmp.ne.s32.totalorder %s173, %s175
      %p179 = scmp.eq.s32.totalorder %s18, 0
      %p180 = por %p178, %p179
      %p181 = scmp.ne.s32.totalorder %s173, %s175
      %p182 = scmp.eq.s32.totalorder %s23, 2
      %p183 = por %p181, %p182
      %p184 = scmp.ne.s32.totalorder %s175, %s176
      %p185 = scmp.eq.s32.totalorder %s23, 0
      %p186 = por %p184, %p185
      %p187 = scmp.ne.s32.totalorder %s175, %s176
      %p188 = scmp.eq.s32.totalorder %s24, 2
      %p189 = por %p187, %p188
      %p191 = scmp.ne.s32.totalorder %s176, %s190
      %p192 = scmp.eq.s32.totalorder %s24, 0
      %p193 = por %p191, %p192
      %s195 = sadd.s32 %s194, 1
      %p198 = scmp.eq.s32.totalorder %s18, 2
      %p199 = scmp.ne.s32.totalorder %s194, %s196
      %p200 = scmp.eq.s32.totalorder %s18, 0
      %p201 = por %p199, %p200
      %p202 = scmp.ne.s32.totalorder %s194, %s196
      %p203 = scmp.eq.s32.totalorder %s23, 2
      %p204 = por %p202, %p203
      %p205 = scmp.ne.s32.totalorder %s196, %s197
      %p206 = scmp.eq.s32.totalorder %s23, 0
      %p207 = por %p205, %p206
      %p208 = scmp.ne.s32.totalorder %s196, %s197
      %p209 = scmp.eq.s32.totalorder %s24, 2
      %p210 = por %p208, %p209
      %p212 = scmp.ne.s32.totalorder %s197, %s211
      %p213 = scmp.eq.s32.totalorder %s24, 0
      %p214 = por %p212, %p213
      %p215 = scmp.eq.s32.totalorder %s25, 2
      %s216 = scalar_select %p215, %s26, 0
      %p217 = scmp.eq.s32.totalorder %s37, 2
      %s218 = scalar_select %p217, %s33, 0
      %s219 = ssub.s32 %s216, %s218
      %p220 = scmp.eq.s32.totalorder %s219, 0
      %s222 = sadd.s32 %s221, 1
      %s223 = scalar_select %p220, %s221, %s222
      %p226 = pneg %p220
      %p227 = scmp.eq.s32.totalorder %s18, 2
      %p228 = por %p226, %p227
      %p229 = scmp.ne.s32.totalorder %s221, %s224
      %p230 = scmp.eq.s32.totalorder %s18, 0
      %p231 = por %p229, %p230
      %p232 = scmp.ne.s32.totalorder %s221, %s224
      %p233 = scmp.eq.s32.totalorder %s23, 2
      %p234 = por %p232, %p233
      %p235 = scmp.ne.s32.totalorder %s224, %s225
      %p236 = scmp.eq.s32.totalorder %s23, 0
      %p237 = por %p235, %p236
      %p238 = scmp.ne.s32.totalorder %s224, %s225
      %p239 = scmp.eq.s32.totalorder %s24, 2
      %p240 = por %p238, %p239
      %p242 = scmp.ne.s32.totalorder %s225, %s241
      %p243 = scmp.eq.s32.totalorder %s24, 0
      %p244 = por %p242, %p243
      %p245 = scmp.le.s32.totalorder 1, %s18
      %p246 = scmp.lt.s32.totalorder %s18, 4
      %p247 = pnand %p245, %p246
      %p248 = pneg %p247
      // Predicated region
      $region9: #{mlp_predictor.1} parent=5 // pred_check
        _
      $region10: #{mlp_predictor.1} parent=5 // pred_check_branch
        %250 = sbr.rel (%p247) target = $region12
      $region11: #{mlp_predictor.1} parent=5 // pred_region
        %s251 = ssub.s32 %s18, 1
        // Predicated region
        $region13: #{mlp_predictor.1} parent=11 // pred_check
          %p252 = pneg %p81
        $region14: #{mlp_predictor.1} parent=11 // pred_check_branch
          %254 = sbr.rel (%p252) target = $region16
        $region15: #{mlp_predictor.1} parent=11 // pred_region
          _
        $region16: #{mlp_predictor.1} parent=11 // pred_fallthru
          _
        // Predicated region
        $region17: #{mlp_predictor.1} parent=11 // pred_check
          %p255 = pneg %p102
        $region18: #{mlp_predictor.1} parent=11 // pred_check_branch
          %257 = sbr.rel (%p255) target = $region20
        $region19: #{mlp_predictor.1} parent=11 // pred_region
          _
        $region20: #{mlp_predictor.1} parent=11 // pred_fallthru
          _
        // Predicated region
        $region21: #{mlp_predictor.1} parent=11 // pred_check
          %p258 = pneg %p123
        $region22: #{mlp_predictor.1} parent=11 // pred_check_branch
          %260 = sbr.rel (%p258) target = $region24
        $region23: #{mlp_predictor.1} parent=11 // pred_region
          _
        $region24: #{mlp_predictor.1} parent=11 // pred_fallthru
          _
        // Predicated region
        $region25: #{mlp_predictor.1} parent=11 // pred_check
          %p261 = pneg %p144
        $region26: #{mlp_predictor.1} parent=11 // pred_check_branch
          %263 = sbr.rel (%p261) target = $region28
        $region27: #{mlp_predictor.1} parent=11 // pred_region
          _
        $region28: #{mlp_predictor.1} parent=11 // pred_fallthru
          _
        // Predicated region
        $region29: #{mlp_predictor.1} parent=11 // pred_check
          %p264 = pneg %p165
        $region30: #{mlp_predictor.1} parent=11 // pred_check_branch
          %266 = sbr.rel (%p264) target = $region32
        $region31: #{mlp_predictor.1} parent=11 // pred_region
          _
        $region32: #{mlp_predictor.1} parent=11 // pred_fallthru
          _
        // Predicated region
        $region33: #{mlp_predictor.1} parent=11 // pred_check
          %p267 = pneg %p186
        $region34: #{mlp_predictor.1} parent=11 // pred_check_branch
          %269 = sbr.rel (%p267) target = $region36
        $region35: #{mlp_predictor.1} parent=11 // pred_region
          _
        $region36: #{mlp_predictor.1} parent=11 // pred_fallthru
          _
        // Predicated region
        $region37: #{mlp_predictor.1} parent=11 // pred_check
          %p270 = pneg %p207
        $region38: #{mlp_predictor.1} parent=11 // pred_check_branch
          %272 = sbr.rel (%p270) target = $region40
        $region39: #{mlp_predictor.1} parent=11 // pred_region
          _
        $region40: #{mlp_predictor.1} parent=11 // pred_fallthru
          _
      $region12: #{mlp_predictor.1} parent=5 // pred_fallthru
        _
      %p273 = scmp.lt.s32.totalorder %s18, 3
      // Predicated region
      $region41: #{mlp_predictor.1} parent=5 // pred_check
        %p274 = pneg %p273
      $region42: #{mlp_predictor.1} parent=5 // pred_check_branch
        %276 = sbr.rel (%p274) target = $region44
      $region43: #{mlp_predictor.1} parent=5 // pred_region
        // Predicated region
        $region45: #{mlp_predictor.1} parent=43 // pred_check
          %p277 = pneg %p54
        $region46: #{mlp_predictor.1} parent=43 // pred_check_branch
          %279 = sbr.rel (%p277) target = $region48
        $region47: #{mlp_predictor.1} parent=43 // pred_region
          %p280 = scmp.eq.s32.totalorder %s25, 0
          %s281 = scalar_select %p280, %s26, 0
          %s282 = smul.u32 2, %s281
          %p283 = scmp.lt.s32.totalorder %s282, 1
          %s284 = scalar_select %p283, %s282, 1
          %s285 = smul.addr %s284, 4
          %s286 = scalar_lea.vmem %s0, %s285
          %p287 = scmp.eq.s32.totalorder %s25, 0
          %s288 = scalar_select %p287, %s26, 0
          %s289 = smul.u32 2, %s288
        $region48: #{mlp_predictor.1} parent=43 // pred_fallthru
          _
      $region44: #{mlp_predictor.1} parent=5 // pred_fallthru
        _
      %p290 = scmp.le.s32.totalorder 1, %s18
      %p291 = scmp.lt.s32.totalorder %s18, 4
      %p292 = pnand %p290, %p291
      %p293 = pneg %p292
      // Predicated region
      $region49: #{mlp_predictor.1} parent=5 // pred_check
        _
      $region50: #{mlp_predictor.1} parent=5 // pred_check_branch
        %295 = sbr.rel (%p292) target = $region52
      $region51: #{mlp_predictor.1} parent=5 // pred_region
        %s296 = ssub.s32 %s18, 1
        %p297 = scmp.eq.s32.totalorder %s27, 0
        %s298 = scalar_select %p297, %s28, 0
        %s299 = smul.u32 2, %s298
        %p300 = scmp.lt.s32.totalorder %s299, 1
        %s301 = scalar_select %p300, %s299, 1
        %s302 = smul.addr %s301, 4
        %s303 = scalar_lea.vmem %s0, %s302
        %p304 = pneg %p60
        %p305 = pneg %p57
        %p306 = pneg %p81
        %p307 = pneg %p78
        %p308 = pneg %p102
        %p309 = pneg %p99
        %p310 = pneg %p123
        %p311 = pneg %p120
        %p312 = pneg %p144
        %p313 = pneg %p141
        %p314 = pneg %p165
        %p315 = pneg %p162
        %p316 = pneg %p186
        %p317 = pneg %p183
        %p318 = pneg %p207
        %p319 = pneg %p204
        %p320 = pneg %p237
        %p321 = pneg %p234
        %s322 = sand.u32 %s224, 1
        %s323 = scalar_lea.sflag [#allocation7], %s322
        %s324 = sand.u32 %s224, 1
        %s325 = smul.addr %s324, 16
        %s326 = scalar_lea.vmem [#allocation6], %s325
        %p327 = scmp.eq.s32.totalorder %s27, 0
        %s328 = scalar_select %p327, %s28, 0
        %s329 = smul.u32 2, %s328
        %p330 = scmp.lt.s32.totalorder %s329, 1
        %s331 = scalar_select %p330, %s329, 1
        %s332 = smul.addr %s331, 4
        %s333 = scalar_lea.vmem %s0, %s332
        %p334 = scmp.eq.s32.totalorder %s27, 0
        %s335 = scalar_select %p334, %s28, 0
        %s336 = smul.u32 2, %s335
        %p337 = scmp.eq.s32.totalorder %s27, 2
        %s338 = scalar_select %p337, %s28, 0
        %s339 = smul.u32 2, %s338
        %s340 = smul.u32 %s28, 16
        %v341 = vlaneseq
        %v342 = vshrl.u32 %v341, 7
        %v343 = vadd.s32 %v342, 8
        %v344 = vstv %s340
        %v345 = vadd.s32 %v344, %v342
        %v346 = vadd.s32 %v344, %v343
        %vm347 = vcmp.lt.s32.totalorder %v345, 10
        %vm348 = vcmp.lt.s32.totalorder %v346, 10
        %p349 = scmp.eq.s32.totalorder %s27, 0
        %p350 = scmp.eq.s32.totalorder %s28, 0
        %p351 = pnand %p349, %p350
        %p352 = pneg %p351
        // Predicated region
        $region53: #{mlp_predictor.1} parent=51 // pred_check
          _
        $region54: #{mlp_predictor.1} parent=51 // pred_check_branch
          %354 = sbr.rel (%p351) target = $region56
        $region55: #{mlp_predictor.1} parent=51 // pred_region
          %355 = vst [vmem:[#allocation3] sm:$0x1] 0.0
          %356 = vst [vmem:[#allocation4] sm:$0x1] 0.0
        $region56: #{mlp_predictor.1} parent=51 // pred_fallthru
          _
        // Predicated region
        $region57: #{mlp_predictor.1} parent=51 // pred_check
          %p357 = pneg %p349
        $region58: #{mlp_predictor.1} parent=51 // pred_check_branch
          %359 = sbr.rel (%p357) target = $region60
        $region59: #{mlp_predictor.1} parent=51 // pred_region
          %v360 = vld [vmem:[%s333] sm:$0xf]
          %v361 = vld [vmem:[%s333 + $0x4] sm:$0xf]
          %v362 = vld [vmem:[%s1] sm:$0xf]
          %v363 = vld [vmem:[%s1 + $0x4] sm:$0xf]
          %v364 = vld [vmem:[%s1 + $0x8] sm:$0xf]
          %v365 = vld [vmem:[%s1 + $0xc] sm:$0xf]
          %v366 = vld [vmem:[%s1 + $0x10] sm:$0xf]
          %v367 = vld [vmem:[%s1 + $0x14] sm:$0xf]
          %v368 = vld [vmem:[%s1 + $0x18] sm:$0xf]
          %v369 = vld [vmem:[%s1 + $0x1c] sm:$0xf]
          %v370 = vld [vmem:[%s1 + $0x20] sm:$0xf]
          %v371 = vld [vmem:[%s1 + $0x24] sm:$0xf]
          %v372 = vld [vmem:[%s1 + $0x28] sm:$0xf]
          %v373 = vld [vmem:[%s1 + $0x2c] sm:$0xf]
          %v374 = vld [vmem:[%s1 + $0x30] sm:$0xf]
          %v375 = vld [vmem:[%s1 + $0x34] sm:$0xf]
          %v376 = vld [vmem:[%s1 + $0x38] sm:$0xf]
          %v377 = vld [vmem:[%s1 + $0x3c] sm:$0xf]
          %v378 = vld [vmem:[%s2] sm:$0x1]
          %v380 = vperm.slane %v378, 0
          %v384 = vunpack.c.l.b16 %v360
          %v385 = vunpack.c.l.b16 %v361
          %v386 = vpack.c.b16 %v385, %v384
          %v404 = vunpack.c.l.b16 %v362
          %v405 = vunpack.c.l.b16 %v363
          %v406 = vunpack.c.l.b16 %v364
          %v407 = vunpack.c.l.b16 %v365
          %v408 = vunpack.c.l.b16 %v366
          %v409 = vunpack.c.l.b16 %v367
          %v410 = vunpack.c.l.b16 %v368
          %v411 = vunpack.c.l.b16 %v369
          %v412 = vunpack.c.l.b16 %v370
          %v413 = vunpack.c.l.b16 %v371
          %v414 = vunpack.c.l.b16 %v372
          %v415 = vunpack.c.l.b16 %v373
          %v416 = vunpack.c.l.b16 %v374
          %v417 = vunpack.c.l.b16 %v375
          %v418 = vunpack.c.l.b16 %v376
          %v419 = vunpack.c.l.b16 %v377
          %v420 = vpack.c.b16 %v405, %v404
          %v421 = vpack.c.b16 %v407, %v406
          %v422 = vpack.c.b16 %v409, %v408
          %v423 = vpack.c.b16 %v411, %v410
          %v424 = vpack.c.b16 %v413, %v412
          %v425 = vpack.c.b16 %v415, %v414
          %v426 = vpack.c.b16 %v417, %v416
          %v427 = vpack.c.b16 %v419, %v418
          %436 = vmatpush.bf16.msra.mxu0 %v427
          %437 = vmatpush.bf16.msra.mxu0 %v426
          %438 = vmatpush.bf16.msra.mxu0 %v425
          %439 = vmatpush.bf16.msra.mxu0 %v424
          %440 = vmatpush.bf16.msra.mxu0 %v423
          %441 = vmatpush.bf16.msra.mxu0 %v422
          %442 = vmatpush.bf16.msra.mxu0 %v421
          %443 = vmatpush.bf16.msra.mxu0 %v420
          %444 = vmatmul.bf16.gmra.mxu0 %v386
          %v445 = vpop.f32.mrf.mxu0
          %v446 = vadd.f32 %v380, %v445
          %v447 = vpop.f32.mrf.mxu0
          %v448 = vadd.f32 %v380, %v447
          %449 = vdwg.mxu0
          %v450 = vpack.c.bf16 %v446, %v446
          %v451 = vpack.c.bf16 %v448, %v448
          %s452 = smul.u32 %s28, 2
          %s453 = smul.addr %s452, 4
          %s454 = scalar_lea.vmem [#allocation2], %s453
          %455 = vst [vmem:[%s454] sm:$0xf] %v450
          %456 = vst [vmem:[%s454 + $0x4] sm:$0xf] %v451
          %v457 = vld [vmem:[#allocation3] sm:$0x1]
          %v458 = vsel %vm347, 1, 0
          %v459 = vsel %vm348, 1, 0
          %vm460 = vcmp.eq.s32.totalorder %v458, 1
          %vm461 = vcmp.eq.s32.totalorder %v459, 1
          %v462 = vsel %vm460, %v446, 0.0
          %v463 = vsel %vm461, %v448, 0.0
          %v464 = vadd.f32 %v462, %v463
          %v465 = vrot.slane %v464, 4
          %v466 = vadd.f32 %v464, %v465
          %v467 = vrot.slane %v466, 2
          %v468 = vadd.f32 %v466, %v467
          %v469 = vrot.slane %v468, 1
          %v470 = vadd.f32 %v468, %v469
          %v471 = vadd.f32 %v457, %v470
          %472 = vst [vmem:[#allocation3] sm:$0x1] %v471
        $region60: #{mlp_predictor.1} parent=51 // pred_fallthru
          _
        %p473 = scmp.eq.s32.totalorder %s27, 1
        %p474 = pnand %p473, %p350
        %p475 = pneg %p474
        // Predicated region
        $region61: #{mlp_predictor.1} parent=51 // pred_check
          _
        $region62: #{mlp_predictor.1} parent=51 // pred_check_branch
          %477 = sbr.rel (%p474) target = $region64
        $region63: #{mlp_predictor.1} parent=51 // pred_region
          %v478 = vld [vmem:[#allocation3] sm:$0x1]
          %v479 = vmul.f32 %v478, 0.1
          %480 = vst [vmem:[#allocation3] sm:$0x1] %v479
        $region64: #{mlp_predictor.1} parent=51 // pred_fallthru
          _
        // Predicated region
        $region65: #{mlp_predictor.1} parent=51 // pred_check
          %p481 = pneg %p473
        $region66: #{mlp_predictor.1} parent=51 // pred_check_branch
          %483 = sbr.rel (%p481) target = $region68
        $region67: #{mlp_predictor.1} parent=51 // pred_region
          %s484 = smul.u32 %s28, 2
          %s485 = smul.addr %s484, 4
          %s486 = scalar_lea.vmem [#allocation2], %s485
          %v487 = vld [vmem:[%s486] sm:$0xf]
          %v488 = vld [vmem:[%s486 + $0x4] sm:$0xf]
          %v489 = vunpack.c.l.bf16 %v487
          %v490 = vunpack.c.l.bf16 %v488
          %v491 = vld [vmem:[#allocation3] sm:$0x1]
          %v493 = vperm.slane %v491, 0
          %v495 = vsub.f32 %v489, %v493
          %v496 = vsub.f32 %v490, %v493
          %v497 = vsel %vm347, 1, 0
          %v498 = vsel %vm348, 1, 0
          %vm499 = vcmp.eq.s32.totalorder %v497, 1
          %vm500 = vcmp.eq.s32.totalorder %v498, 1
          %v501 = vsel %vm499, %v495, 0.0
          %v502 = vsel %vm500, %v496, 0.0
          %v503 = vld [vmem:[#allocation4] sm:$0x1]
          %v504 = vmul.f32 %v501, %v501
          %v505 = vmul.f32 %v502, %v502
          %v506 = vadd.f32 %v504, %v505
          %v507 = vrot.slane %v506, 4
          %v508 = vadd.f32 %v506, %v507
          %v509 = vrot.slane %v508, 2
          %v510 = vadd.f32 %v508, %v509
          %v511 = vrot.slane %v510, 1
          %v512 = vadd.f32 %v510, %v511
          %v513 = vadd.f32 %v503, %v512
          %514 = vst [vmem:[#allocation4] sm:$0x1] %v513
        $region68: #{mlp_predictor.1} parent=51 // pred_fallthru
          _
        %p515 = scmp.eq.s32.totalorder %s27, 2
        %p516 = pnand %p515, %p350
        %p517 = pneg %p516
        // Predicated region
        $region69: #{mlp_predictor.1} parent=51 // pred_check
          _
        $region70: #{mlp_predictor.1} parent=51 // pred_check_branch
          %519 = sbr.rel (%p516) target = $region72
        $region71: #{mlp_predictor.1} parent=51 // pred_region
          %v520 = vld [vmem:[#allocation4] sm:$0x1]
          %v521 = vmul.f32 %v520, 0.1
          %v522 = vadd.f32 %v521, 1e-05
          %v523 = vrsqrt.pop %v522
          %v524 = vmul.f32 %v523, %v522
          %v525 = vmul.f32 %v524, %v523
          %v526 = vmul.f32 0.5, %v525
          %v527 = vsub.f32 1.5, %v526
          %v528 = vmul.f32 %v523, %v527
          %vm529 = vweird.f32 %v522
          %vm530 = vweird.f32 %v523
          %vm531 = vmor %vm529, %vm530
          %v532 = vsel %vm531, %v523, %v528
          %v533 = vld [vmem:[%s3] sm:$0x1]
          %v534 = vmul.f32 %v532, %v533
          %v535 = vld [vmem:[%s4] sm:$0x1]
          %v536 = vld [vmem:[#allocation3] sm:$0x1]
          %v537 = vmul.f32 %v536, %v534
          %v538 = vsub.f32 %v535, %v537
          %539 = vst [vmem:[#allocation4] sm:$0x1] %v534
          %540 = vst [vmem:[#allocation3] sm:$0x1] %v538
        $region72: #{mlp_predictor.1} parent=51 // pred_fallthru
          _
        // Predicated region
        $region73: #{mlp_predictor.1} parent=51 // pred_check
          %p541 = pneg %p515
        $region74: #{mlp_predictor.1} parent=51 // pred_check_branch
          %543 = sbr.rel (%p541) target = $region76
        $region75: #{mlp_predictor.1} parent=51 // pred_region
          %s544 = smul.u32 %s28, 2
          %s545 = smul.addr %s544, 4
          %s546 = scalar_lea.vmem [#allocation2], %s545
          %v547 = vld [vmem:[%s546] sm:$0xf]
          %v548 = vld [vmem:[%s546 + $0x4] sm:$0xf]
          %v549 = vunpack.c.l.bf16 %v547
          %v550 = vunpack.c.l.bf16 %v548
          %v551 = vld [vmem:[#allocation4] sm:$0x1]
          %v553 = vperm.slane %v551, 0
          %v555 = vmul.f32 %v549, %v553
          %v556 = vmul.f32 %v550, %v553
          %v557 = vld [vmem:[#allocation3] sm:$0x1]
          %v559 = vperm.slane %v557, 0
          %v561 = vadd.f32 %v555, %v559
          %v562 = vadd.f32 %v556, %v559
          %s563 = sld [smem:[#allocation5]]
          %vm564 = vcmp.ge.f32.partialorder %v561, 0.0
          %vm565 = vcmp.ge.f32.partialorder %v562, 0.0
          %v566 = vstv %s563
          %v567 = vmul.f32 %v566, %v561
          %v568 = vmul.f32 %v566, %v562
          %v569 = vsel %vm564, %v561, %v567
          %v570 = vsel %vm565, %v562, %v568
          %v571 = vpack.c.bf16 %v570, %v569
          %v572 = vld [vmem:[%s6] sm:$0xf]
          %v573 = vld [vmem:[%s6 + $0x4] sm:$0xf]
          %v574 = vld [vmem:[%s6 + $0x8] sm:$0xf]
          %v575 = vld [vmem:[%s6 + $0xc] sm:$0xf]
          %v576 = vld [vmem:[%s6 + $0x10] sm:$0xf]
          %v577 = vld [vmem:[%s6 + $0x14] sm:$0xf]
          %v578 = vld [vmem:[%s6 + $0x18] sm:$0xf]
          %v579 = vld [vmem:[%s6 + $0x1c] sm:$0xf]
          %v580 = vld [vmem:[%s6 + $0x20] sm:$0xf]
          %v581 = vld [vmem:[%s6 + $0x24] sm:$0xf]
          %v582 = vld [vmem:[%s6 + $0x28] sm:$0xf]
          %v583 = vld [vmem:[%s6 + $0x2c] sm:$0xf]
          %v584 = vld [vmem:[%s6 + $0x30] sm:$0xf]
          %v585 = vld [vmem:[%s6 + $0x34] sm:$0xf]
          %v586 = vld [vmem:[%s6 + $0x38] sm:$0xf]
          %v587 = vld [vmem:[%s6 + $0x3c] sm:$0xf]
          %v588 = vld [vmem:[%s7] sm:$0x1]
          %v590 = vperm.slane %v588, 0
          %v608 = vunpack.c.l.b16 %v572
          %v609 = vunpack.c.l.b16 %v573
          %v610 = vunpack.c.l.b16 %v574
          %v611 = vunpack.c.l.b16 %v575
          %v612 = vunpack.c.l.b16 %v576
          %v613 = vunpack.c.l.b16 %v577
          %v614 = vunpack.c.l.b16 %v578
          %v615 = vunpack.c.l.b16 %v579
          %v616 = vunpack.c.l.b16 %v580
          %v617 = vunpack.c.l.b16 %v581
          %v618 = vunpack.c.l.b16 %v582
          %v619 = vunpack.c.l.b16 %v583
          %v620 = vunpack.c.l.b16 %v584
          %v621 = vunpack.c.l.b16 %v585
          %v622 = vunpack.c.l.b16 %v586
          %v623 = vunpack.c.l.b16 %v587
          %v624 = vpack.c.b16 %v609, %v608
          %v625 = vpack.c.b16 %v611, %v610
          %v626 = vpack.c.b16 %v613, %v612
          %v627 = vpack.c.b16 %v615, %v614
          %v628 = vpack.c.b16 %v617, %v616
          %v629 = vpack.c.b16 %v619, %v618
          %v630 = vpack.c.b16 %v621, %v620
          %v631 = vpack.c.b16 %v623, %v622
          %640 = vmatpush.bf16.msra.mxu0 %v631
          %641 = vmatpush.bf16.msra.mxu0 %v630
          %642 = vmatpush.bf16.msra.mxu0 %v629
          %643 = vmatpush.bf16.msra.mxu0 %v628
          %644 = vmatpush.bf16.msra.mxu0 %v627
          %645 = vmatpush.bf16.msra.mxu0 %v626
          %646 = vmatpush.bf16.msra.mxu0 %v625
          %647 = vmatpush.bf16.msra.mxu0 %v624
          %648 = vmatmul.bf16.gmra.mxu0 %v571
          %v649 = vpop.f32.mrf.mxu0
          %v650 = vadd.f32 %v590, %v649
          %v651 = vpop.f32.mrf.mxu0
          %v652 = vadd.f32 %v590, %v651
          %653 = vdwg.mxu0
          %654 = vst [vmem:[%s326] sm:$0xff] %v650
          %655 = vst [vmem:[%s326 + $0x8] sm:$0xff] %v652
        $region76: #{mlp_predictor.1} parent=51 // pred_fallthru
          _
        %s656 = sand.u32 %s224, 1
        %s657 = scalar_lea.sflag [#allocation7], %s656
        %s658 = sand.u32 %s224, 1
        %s659 = smul.addr %s658, 16
        %s660 = scalar_lea.vmem [#allocation6], %s659
        // Predicated region
        $region77: #{mlp_predictor.1} parent=51 // pred_check
          %p661 = pneg %p234
        $region78: #{mlp_predictor.1} parent=51 // pred_check_branch
          %663 = sbr.rel (%p661) target = $region80
        $region79: #{mlp_predictor.1} parent=51 // pred_region
          %p664 = scmp.eq.s32.totalorder %s27, 2
          %s665 = scalar_select %p664, %s28, 0
          %s666 = smul.u32 2, %s665
          %668 = vsyncadd %s657, 0
          %s669 = smul.addr %s666, 8
          %s670 = scalar_lea.hbm %s8, %s669
          %s671 = sshll.u32 %s660, 4
          %s672 = int_to_ptr.vmem [resolvable:$true] %s671
          %s673 = sshll.u32 %s670, 4
          %s674 = int_to_ptr.hbm [resolvable:$true] %s673
          %679 = dma.vmem_to_hbm [thread:$0]  %s672, 256, %s674, %s657, 128, 128, 8
        $region80: #{mlp_predictor.1} parent=51 // pred_fallthru
          _
      $region52: #{mlp_predictor.1} parent=5 // pred_fallthru
        _
      %p680 = scmp.le.s32.totalorder 2, %s18
      // Predicated region
      $region81: #{mlp_predictor.1} parent=5 // pred_check
        %p681 = pneg %p680
      $region82: #{mlp_predictor.1} parent=5 // pred_check_branch
        %683 = sbr.rel (%p681) target = $region84
      $region83: #{mlp_predictor.1} parent=5 // pred_region
        %s684 = ssub.s32 %s18, 2
        // Predicated region
        $region85: #{mlp_predictor.1} parent=83 // pred_check
          %p685 = pneg %p240
        $region86: #{mlp_predictor.1} parent=83 // pred_check_branch
          %687 = sbr.rel (%p685) target = $region88
        $region87: #{mlp_predictor.1} parent=83 // pred_region
          %s688 = sand.u32 %s225, 1
          %s689 = scalar_lea.sflag [#allocation7], %s688
          %s690 = sand.u32 %s225, 1
          %s691 = smul.addr %s690, 16
          %s692 = scalar_lea.vmem [#allocation6], %s691
          %694 = dma.done %s689, 256
        $region88: #{mlp_predictor.1} parent=83 // pred_fallthru
          _
      $region84: #{mlp_predictor.1} parent=5 // pred_fallthru
        _
    $region6: #{mlp_predictor.1} parent=1 // loop_footer
      %s22 = sadd.s32 1, %s18
    $region7: #{mlp_predictor.1} parent=1 // loop_footer_branch
      %17 = sbr.rel target = $region3
    $region8: #{mlp_predictor.1} parent=1 // loop_exit
      _
    %695 = vsyncpa [#allocation7], 1
    %s696 = scalar_lea.sflag [#allocation7], 1
    %697 = vsyncpa %s696, 1

</llo_original>
